<compile_context>
chip_gen: v5e
topology: v5e:2x2
jax: 0.10.0
libtpu: 0.0.40
codegen_flags: <defaults>
</compile_context>

<pallas_src>
import functools

import jax
import jax.numpy as jnp
from jax.experimental import pallas as pl
from jax.experimental.pallas import tpu as pltpu


def _round_up(x, m):
    return ((x + m - 1) // m) * m


def _swish(x):
    return x * jax.nn.sigmoid(x)


def two_linear_kernel(x_ref, w1_ref, w2_ref, o_ref, *, act: bool):
    # lin1: [tm, in_p](bf16) @ [in_p, mid_p](bf16) -> f32 [tm, mid_p] on the MXU.
    h = jnp.dot(x_ref[...], w1_ref[...], preferred_element_type=jnp.float32)
    if act:
        h = _swish(h)  # VPU/EUP work; hidden under MXU slack at large tiles.
    # lin2: downcast h to bf16 to feed the MXU natively, accumulate in f32.
    y = jnp.dot(h.astype(w2_ref.dtype), w2_ref[...],
                preferred_element_type=jnp.float32)
    if act:
        y = _swish(y)
    o_ref[...] = y.astype(o_ref.dtype)


def prepare_two_linear_params(w1, w2, compute_dtype=jnp.bfloat16):
    """One-time weight prep (hoisted out of the per-call path).

    w1: [mid_c, in_c], w2: [out_c, mid_c]   (PyTorch F.linear layout)
    Returns W1^T / W2^T zero-padded to 128-multiples, cast to compute_dtype.
    Zero padding is mathematically exact: padded x columns hit zero weight
    rows, padded hidden channels are exactly 0 (and swish(0)=0), padded
    output columns are sliced off by the caller.
    """
    mid_c, in_c = w1.shape
    out_c, mid_c2 = w2.shape
    assert mid_c2 == mid_c
    in_p = _round_up(in_c, 128)
    mid_p = _round_up(mid_c, 128)
    out_p = _round_up(out_c, 128)
    w1_t = jnp.zeros((in_p, mid_p), compute_dtype)
    w1_t = w1_t.at[:in_c, :mid_c].set(w1.T.astype(compute_dtype))
    w2_t = jnp.zeros((mid_p, out_p), compute_dtype)
    w2_t = w2_t.at[:mid_c, :out_c].set(w2.T.astype(compute_dtype))
    return w1_t, w2_t


@functools.partial(jax.jit,
                   static_argnames=("out_c", "act", "tm", "compute_dtype"))
def two_linear(x, w1_t, w2_t, *, out_c, act=False, tm=256,
               compute_dtype=jnp.bfloat16):
    """x: [N, in_c]; w1_t/w2_t: padded transposed weights from prepare()."""
    N, in_c = x.shape
    in_p, mid_p = w1_t.shape
    mid_p2, out_p = w2_t.shape
    assert mid_p2 == mid_p and in_p >= in_c

    # Tile: multiple of 8 sublanes, shrink if N is small; pad N up to it.
    tm_eff = min(tm, max(8, _round_up(N, 8)))
    n_pad = _round_up(N, tm_eff)
    grid = n_pad // tm_eff

    # Per-call input prep: pad rows/features with zeros, cast to bf16.
    x_p = jnp.zeros((n_pad, in_p), compute_dtype)
    x_p = x_p.at[:N, :in_c].set(x.astype(compute_dtype))

    # VMEM budget: x/out double-buffers + (double-buffered) resident weights
    # + f32 intermediate; 2x headroom, capped to be safe on v7x (64 MiB).
    dsz = jnp.dtype(compute_dtype).itemsize
    osz = jnp.dtype(x.dtype).itemsize
    vmem_bytes = (2 * tm_eff * in_p * dsz
                  + 2 * tm_eff * out_p * osz
                  + 2 * (in_p * mid_p + mid_p * out_p) * dsz
                  + tm_eff * mid_p * 4)
    vmem_limit = int(min(max(2 * vmem_bytes, 32 * 1024 * 1024),
                         64 * 1024 * 1024))

    y_pad = pl.pallas_call(
        functools.partial(two_linear_kernel, act=act),
        out_shape=jax.ShapeDtypeStruct((n_pad, out_p), x.dtype),
        grid_spec=pltpu.PrefetchScalarGridSpec(
            num_scalar_prefetch=0,
            grid=(grid,),
            in_specs=[
                pl.BlockSpec((tm_eff, in_p), lambda i: (i, 0)),   # x row-tile
                pl.BlockSpec((in_p, mid_p), lambda i: (0, 0)),    # W1^T resident
                pl.BlockSpec((mid_p, out_p), lambda i: (0, 0)),   # W2^T resident
            ],
            out_specs=pl.BlockSpec((tm_eff, out_p), lambda i: (i, 0)),
        ),
        compiler_params=pltpu.CompilerParams(
            dimension_semantics=("parallel",),
            vmem_limit_bytes=vmem_limit),
    )(x_p, w1_t, w2_t)

    # Slice off row / lane padding before returning.
    return y_pad[:N, :out_c]


def glorot(key, out_c, in_c, dtype=jnp.float32):
    # PyG's glorot init: uniform(-a, a), a = sqrt(6 / (fan_in + fan_out))
    a = (6.0 / (in_c + out_c)) ** 0.5
    return jax.random.uniform(key, (out_c, in_c), dtype=dtype, minval=-a, maxval=a)


if __name__ == "__main__":
    # Small shapes consistent with the module: N tokens x in_channels features.
    # N=1024 with tm=256 -> grid of 4 (exercises tiling / megacore sharding).
    N, in_c, mid_c, out_c = 1024, 32, 64, 32

    key = jax.random.PRNGKey(0)
    kx, k1, k2 = jax.random.split(key, 3)

    x = jax.random.normal(kx, (N, in_c), dtype=jnp.float32)
    w1 = glorot(k1, mid_c, in_c)   # lin1.weight  [middle, in]
    w2 = glorot(k2, out_c, mid_c)  # lin2.weight  [out, middle]

    # One-time weight prep (transpose + pad + bf16 cast), hoisted out of calls.
    w1_t, w2_t = prepare_two_linear_params(w1, w2)

    for act in (False, True):
        y = two_linear(x, w1_t, w2_t, out_c=out_c, act=act)
        y = jax.block_until_ready(y)

        # Pure-f32 reference matching F.linear semantics.
        h_ref = x @ w1.T
        if act:
            h_ref = h_ref * jax.nn.sigmoid(h_ref)
        y_ref = h_ref @ w2.T
        if act:
            y_ref = y_ref * jax.nn.sigmoid(y_ref)

        assert y.shape == (N, out_c)
        # bf16 MXU inputs (f32 accumulate) vs pure-f32 reference -> loose tol.
        assert jnp.allclose(y, y_ref, atol=5e-2, rtol=5e-2), f"mismatch (act={act})"

    print("KERNEL_OK")
</pallas_src>

<mosaic_0001>
module attributes {stable_mosaic.version = 11 : i64} {
  func.func @two_linear_kernel(%arg0: i32, %arg1: memref<256x128xbf16, #tpu.memory_space<vmem>>, %arg2: memref<128x128xbf16, #tpu.memory_space<vmem>>, %arg3: memref<128x128xbf16, #tpu.memory_space<vmem>>, %arg4: memref<256x128xf32, #tpu.memory_space<vmem>>) attributes {dimension_semantics = [#tpu.dimension_semantics<parallel>], iteration_bounds = array<i64: 4>, scalar_prefetch = 0 : i64, scratch_operands = 0 : i64, tpu.core_type = #tpu.core_type<tc>, window_params = [{transform_indices = @transform_0, window_bounds = array<i64: 256, 128>}, {pipeline_mode = #tpu.pipeline_mode<synchronous>, transform_indices = @transform_1, window_bounds = array<i64: 128, 128>}, {pipeline_mode = #tpu.pipeline_mode<synchronous>, transform_indices = @transform_2, window_bounds = array<i64: 128, 128>}, {transform_indices = @transform_3, window_bounds = array<i64: 256, 128>}]} {
    %c0 = arith.constant 0 : index
    %c0_0 = arith.constant 0 : index
    %0 = vector.load %arg1[%c0, %c0_0] : memref<256x128xbf16, #tpu.memory_space<vmem>>, vector<256x128xbf16>
    %c0_1 = arith.constant 0 : index
    %c0_2 = arith.constant 0 : index
    %1 = vector.load %arg2[%c0_1, %c0_2] : memref<128x128xbf16, #tpu.memory_space<vmem>>, vector<128x128xbf16>
    %cst = arith.constant dense<0.000000e+00> : vector<256x128xf32>
    %2 = tpu.matmul %0, %1, %cst {dimension_numbers = #tpu.dot_dimension_numbers<[1], [0], [0], [1], [0, 0, 1, 1], [], []>} : vector<256x128xbf16>, vector<128x128xbf16>, vector<256x128xf32> -> vector<256x128xf32>
    %3 = arith.truncf %2 : vector<256x128xf32> to vector<256x128xbf16>
    %c0_3 = arith.constant 0 : index
    %c0_4 = arith.constant 0 : index
    %4 = vector.load %arg3[%c0_3, %c0_4] : memref<128x128xbf16, #tpu.memory_space<vmem>>, vector<128x128xbf16>
    %cst_5 = arith.constant dense<0.000000e+00> : vector<256x128xf32>
    %5 = tpu.matmul %3, %4, %cst_5 {dimension_numbers = #tpu.dot_dimension_numbers<[1], [0], [0], [1], [0, 0, 1, 1], [], []>} : vector<256x128xbf16>, vector<128x128xbf16>, vector<256x128xf32> -> vector<256x128xf32>
    %c0_6 = arith.constant 0 : index
    %c0_7 = arith.constant 0 : index
    %6 = vector.load %arg4[%c0_6, %c0_7] : memref<256x128xf32, #tpu.memory_space<vmem>>, vector<256x128xf32>
    tpu.vector_store %arg4[%c0_6, %c0_7], %5 {strides = array<i32>} : memref<256x128xf32, #tpu.memory_space<vmem>>, vector<256x128xf32>,
    return
  }
  func.func @transform_0(%arg0: i32) -> (i32, i32) {
    %c0_i32 = arith.constant 0 : i32
    %c0_i32_0 = arith.constant 0 : i32
    return %arg0, %c0_i32 : i32, i32
  }
  func.func @transform_1(%arg0: i32) -> (i32, i32) {
    %c0_i32 = arith.constant 0 : i32
    %c0_i32_0 = arith.constant 0 : i32
    %c0_i32_1 = arith.constant 0 : i32
    return %c0_i32, %c0_i32_0 : i32, i32
  }
  func.func @transform_2(%arg0: i32) -> (i32, i32) {
    %c0_i32 = arith.constant 0 : i32
    %c0_i32_0 = arith.constant 0 : i32
    %c0_i32_1 = arith.constant 0 : i32
    return %c0_i32, %c0_i32_0 : i32, i32
  }
  func.func @transform_3(%arg0: i32) -> (i32, i32) {
    %c0_i32 = arith.constant 0 : i32
    %c0_i32_0 = arith.constant 0 : i32
    return %arg0, %c0_i32 : i32, i32
  }
}

</mosaic_0001>

<llo_original>
// kernel: two_linear.1
$region0: #{two_linear.1}
  #allocation0 [shape = 'u32[]', space=smem, size = 0x4, offset = 0x4, fixed_abs, tag = 'smem constant byte address 0x4 - core index']
  #allocation1 [shape = 'u32[72,128]{1,0:T(1,128)}', space=vmem, size = 0x9000, scoped, tag = 'internal scratch']
  %s0 = inlined_call_operand.vmem [shape: bf16[1024,128], index: 0, kind: input, shape index: {}]
  %s1 = inlined_call_operand.vmem [shape: bf16[128,128], index: 1, kind: input, shape index: {}]
  %s2 = inlined_call_operand.vmem [shape: bf16[128,128], index: 2, kind: input, shape index: {}]
  %s3 = inlined_call_operand.vmem [shape: f32[1024,128], index: 3, kind: output, shape index: {}]
  %s4 = sld [smem:[#allocation0]]
  $region45: #{two_linear.1} parent=0
    _
  %s6 = ssub.s32 1, %s4
  %s7 = scalar_select 0, %s6, %s4
  loop: start=0, step=1, limit=6
  $region2: #{two_linear.1} parent=0 // loop_pre_header
    _
  $region3: #{two_linear.1} parent=0 // loop_header
    %s9 = sphi 0, %s13
    %p10 = scmp.ge.s32.totalorder %s9, 6
    %s19 = sphi 0, %s21
    %s22 = sphi 0, %s19
    %s23 = sphi 0, %s22
    %s39 = sphi 0, %s23
    %s43 = sphi 0, %s43
    %s45 = sphi 0, %s43
    %s46 = sphi 0, %s45
    %s60 = sphi 0, %s46
    %s64 = sphi 0, %s64
    %s66 = sphi 0, %s64
    %s67 = sphi 0, %s66
    %s81 = sphi 0, %s67
    %s87 = sphi 0, %s89
    %s90 = sphi 0, %s87
    %s91 = sphi 0, %s90
    %s107 = sphi 0, %s91
  $region4: #{two_linear.1} parent=0 // loop_header_branch
    %12 = sbr.rel (%p10) target = $region8
  $region5: #{two_linear.1} parent=0 // loop_body
    %s14 = ssub.s32 %s9, 1
    %s15 = ssub.s32 %s9, 2
    %s16 = sadd.s32 %s9, 1
    %s17 = ssub.s32 %s9, %s16
    %p18 = scmp.eq.s32.totalorder %s17, 0
    %s20 = sadd.s32 %s19, 1
    %s21 = scalar_select %p18, %s19, %s20
    %p24 = pneg %p18
    %p25 = scmp.eq.s32.totalorder %s9, 3
    %p26 = por %p24, %p25
    %p27 = scmp.ne.s32.totalorder %s19, %s22
    %p28 = scmp.eq.s32.totalorder %s9, 0
    %p29 = por %p27, %p28
    %p30 = scmp.ne.s32.totalorder %s19, %s22
    %p31 = scmp.eq.s32.totalorder %s14, 3
    %p32 = por %p30, %p31
    %p33 = scmp.ne.s32.totalorder %s22, %s23
    %p34 = scmp.eq.s32.totalorder %s14, 0
    %p35 = por %p33, %p34
    %p36 = scmp.ne.s32.totalorder %s22, %s23
    %p37 = scmp.eq.s32.totalorder %s15, 3
    %p38 = por %p36, %p37
    %p40 = scmp.ne.s32.totalorder %s23, %s39
    %p41 = scmp.eq.s32.totalorder %s15, 0
    %p42 = por %p40, %p41
    %s44 = sadd.s32 %s43, 1
    %p47 = scmp.eq.s32.totalorder %s9, 3
    %p48 = scmp.ne.s32.totalorder %s43, %s45
    %p49 = scmp.eq.s32.totalorder %s9, 0
    %p50 = por %p48, %p49
    %p51 = scmp.ne.s32.totalorder %s43, %s45
    %p52 = scmp.eq.s32.totalorder %s14, 3
    %p53 = por %p51, %p52
    %p54 = scmp.ne.s32.totalorder %s45, %s46
    %p55 = scmp.eq.s32.totalorder %s14, 0
    %p56 = por %p54, %p55
    %p57 = scmp.ne.s32.totalorder %s45, %s46
    %p58 = scmp.eq.s32.totalorder %s15, 3
    %p59 = por %p57, %p58
    %p61 = scmp.ne.s32.totalorder %s46, %s60
    %p62 = scmp.eq.s32.totalorder %s15, 0
    %p63 = por %p61, %p62
    %s65 = sadd.s32 %s64, 1
    %p68 = scmp.eq.s32.totalorder %s9, 3
    %p69 = scmp.ne.s32.totalorder %s64, %s66
    %p70 = scmp.eq.s32.totalorder %s9, 0
    %p71 = por %p69, %p70
    %p72 = scmp.ne.s32.totalorder %s64, %s66
    %p73 = scmp.eq.s32.totalorder %s14, 3
    %p74 = por %p72, %p73
    %p75 = scmp.ne.s32.totalorder %s66, %s67
    %p76 = scmp.eq.s32.totalorder %s14, 0
    %p77 = por %p75, %p76
    %p78 = scmp.ne.s32.totalorder %s66, %s67
    %p79 = scmp.eq.s32.totalorder %s15, 3
    %p80 = por %p78, %p79
    %p82 = scmp.ne.s32.totalorder %s67, %s81
    %p83 = scmp.eq.s32.totalorder %s15, 0
    %p84 = por %p82, %p83
    %s85 = ssub.s32 %s9, %s16
    %p86 = scmp.eq.s32.totalorder %s85, 0
    %s88 = sadd.s32 %s87, 1
    %s89 = scalar_select %p86, %s87, %s88
    %p92 = pneg %p86
    %p93 = scmp.eq.s32.totalorder %s9, 3
    %p94 = por %p92, %p93
    %p95 = scmp.ne.s32.totalorder %s87, %s90
    %p96 = scmp.eq.s32.totalorder %s9, 0
    %p97 = por %p95, %p96
    %p98 = scmp.ne.s32.totalorder %s87, %s90
    %p99 = scmp.eq.s32.totalorder %s14, 3
    %p100 = por %p98, %p99
    %p101 = scmp.ne.s32.totalorder %s90, %s91
    %p102 = scmp.eq.s32.totalorder %s14, 0
    %p103 = por %p101, %p102
    %p104 = scmp.ne.s32.totalorder %s90, %s91
    %p105 = scmp.eq.s32.totalorder %s15, 3
    %p106 = por %p104, %p105
    %p108 = scmp.ne.s32.totalorder %s91, %s107
    %p109 = scmp.eq.s32.totalorder %s15, 0
    %p110 = por %p108, %p109
    %p111 = scmp.le.s32.totalorder 1, %s9
    %p112 = scmp.lt.s32.totalorder %s9, 5
    %p113 = pnand %p111, %p112
    %p114 = pneg %p113
    // Predicated region
    $region9: #{two_linear.1} parent=5 // pred_check
      _
    $region10: #{two_linear.1} parent=5 // pred_check_branch
      %116 = sbr.rel (%p113) target = $region12
    $region11: #{two_linear.1} parent=5 // pred_region
      %s117 = ssub.s32 %s9, 1
      // Predicated region
      $region13: #{two_linear.1} parent=11 // pred_check
        %p118 = pneg %p56
      $region14: #{two_linear.1} parent=11 // pred_check_branch
        %120 = sbr.rel (%p118) target = $region16
      $region15: #{two_linear.1} parent=11 // pred_region
        _
      $region16: #{two_linear.1} parent=11 // pred_fallthru
        _
      // Predicated region
      $region17: #{two_linear.1} parent=11 // pred_check
        %p121 = pneg %p77
      $region18: #{two_linear.1} parent=11 // pred_check_branch
        %123 = sbr.rel (%p121) target = $region20
      $region19: #{two_linear.1} parent=11 // pred_region
        _
      $region20: #{two_linear.1} parent=11 // pred_fallthru
        _
    $region12: #{two_linear.1} parent=5 // pred_fallthru
      _
    %p124 = scmp.lt.s32.totalorder %s9, 4
    // Predicated region
    $region21: #{two_linear.1} parent=5 // pred_check
      %p125 = pneg %p124
    $region22: #{two_linear.1} parent=5 // pred_check_branch
      %127 = sbr.rel (%p125) target = $region24
    $region23: #{two_linear.1} parent=5 // pred_region
      // Predicated region
      $region25: #{two_linear.1} parent=23 // pred_check
        %p128 = pneg %p29
      $region26: #{two_linear.1} parent=23 // pred_check_branch
        %130 = sbr.rel (%p128) target = $region28
      $region27: #{two_linear.1} parent=23 // pred_region
        %s131 = smul.u32 32, %s9
        %p132 = scmp.lt.s32.totalorder %s131, 127
        %s133 = scalar_select %p132, %s131, 127
        %s134 = smul.addr %s133, 4
        %s135 = scalar_lea.vmem %s0, %s134
        %s136 = smul.u32 32, %s9
      $region28: #{two_linear.1} parent=23 // pred_fallthru
        _
    $region24: #{two_linear.1} parent=5 // pred_fallthru
      _
    %p137 = scmp.le.s32.totalorder 1, %s9
    %p138 = scmp.lt.s32.totalorder %s9, 5
    %p139 = pnand %p137, %p138
    %p140 = pneg %p139
    // Predicated region
    $region29: #{two_linear.1} parent=5 // pred_check
      _
    $region30: #{two_linear.1} parent=5 // pred_check_branch
      %142 = sbr.rel (%p139) target = $region32
    $region31: #{two_linear.1} parent=5 // pred_region
      %s143 = ssub.s32 %s9, 1
      %s144 = smul.u32 32, %s14
      %p145 = scmp.lt.s32.totalorder %s144, 127
      %s146 = scalar_select %p145, %s144, 127
      %s147 = smul.addr %s146, 4
      %s148 = scalar_lea.vmem %s0, %s147
      %p149 = pneg %p35
      %p150 = pneg %p32
      %p151 = pneg %p56
      %p152 = pneg %p53
      %p153 = pneg %p77
      %p154 = pneg %p74
      %p155 = pneg %p103
      %p156 = pneg %p100
      %s157 = smul.u32 32, %s14
      %p158 = scmp.lt.s32.totalorder %s157, 127
      %s159 = scalar_select %p158, %s157, 127
      %s160 = smul.addr %s159, 8
      %s161 = scalar_lea.vmem %s3, %s160
      %s162 = smul.u32 32, %s14
      %p163 = scmp.lt.s32.totalorder %s162, 127
      %s164 = scalar_select %p163, %s162, 127
      %s165 = smul.addr %s164, 4
      %s166 = scalar_lea.vmem %s0, %s165
      %s167 = smul.u32 32, %s14
      %s168 = smul.u32 32, %s14
      %p169 = scmp.lt.s32.totalorder %s168, 127
      %s170 = scalar_select %p169, %s168, 127
      %s171 = smul.addr %s170, 8
      %s172 = scalar_lea.vmem %s3, %s171
      %s173 = smul.u32 32, %s14
      %v174 = vld [vmem:[%s166] sm:$0xf]
      %v175 = vld [vmem:[%s166 + $0x4] sm:$0xf]
      %v176 = vld [vmem:[%s166 + $0x8] sm:$0xf]
      %v177 = vld [vmem:[%s166 + $0xc] sm:$0xf]
      %v178 = vld [vmem:[%s166 + $0x10] sm:$0xf]
      %v179 = vld [vmem:[%s166 + $0x14] sm:$0xf]
      %v180 = vld [vmem:[%s166 + $0x18] sm:$0xf]
      %v181 = vld [vmem:[%s166 + $0x1c] sm:$0xf]
      %v182 = vld [vmem:[%s166 + $0x20] sm:$0xf]
      %v183 = vld [vmem:[%s166 + $0x24] sm:$0xf]
      %v184 = vld [vmem:[%s166 + $0x28] sm:$0xf]
      %v185 = vld [vmem:[%s166 + $0x2c] sm:$0xf]
      %v186 = vld [vmem:[%s166 + $0x30] sm:$0xf]
      %v187 = vld [vmem:[%s166 + $0x34] sm:$0xf]
      %v188 = vld [vmem:[%s166 + $0x38] sm:$0xf]
      %v189 = vld [vmem:[%s166 + $0x3c] sm:$0xf]
      %v190 = vld [vmem:[%s166 + $0x40] sm:$0xf]
      %v191 = vld [vmem:[%s166 + $0x44] sm:$0xf]
      %v192 = vld [vmem:[%s166 + $0x48] sm:$0xf]
      %v193 = vld [vmem:[%s166 + $0x4c] sm:$0xf]
      %v194 = vld [vmem:[%s166 + $0x50] sm:$0xf]
      %v195 = vld [vmem:[%s166 + $0x54] sm:$0xf]
      %v196 = vld [vmem:[%s166 + $0x58] sm:$0xf]
      %v197 = vld [vmem:[%s166 + $0x5c] sm:$0xf]
      %v198 = vld [vmem:[%s166 + $0x60] sm:$0xf]
      %v199 = vld [vmem:[%s166 + $0x64] sm:$0xf]
      %v200 = vld [vmem:[%s166 + $0x68] sm:$0xf]
      %v201 = vld [vmem:[%s166 + $0x6c] sm:$0xf]
      %v202 = vld [vmem:[%s166 + $0x70] sm:$0xf]
      %v203 = vld [vmem:[%s166 + $0x74] sm:$0xf]
      %v204 = vld [vmem:[%s166 + $0x78] sm:$0xf]
      %v205 = vld [vmem:[%s166 + $0x7c] sm:$0xf]
      %v206 = vld [vmem:[%s1] sm:$0xf]
      %v207 = vld [vmem:[%s1 + $0x4] sm:$0xf]
      %v208 = vld [vmem:[%s1 + $0x8] sm:$0xf]
      %v209 = vld [vmem:[%s1 + $0xc] sm:$0xf]
      %v210 = vld [vmem:[%s1 + $0x10] sm:$0xf]
      %v211 = vld [vmem:[%s1 + $0x14] sm:$0xf]
      %v212 = vld [vmem:[%s1 + $0x18] sm:$0xf]
      %v213 = vld [vmem:[%s1 + $0x1c] sm:$0xf]
      %v214 = vld [vmem:[%s1 + $0x20] sm:$0xf]
      %v215 = vld [vmem:[%s1 + $0x24] sm:$0xf]
      %v216 = vld [vmem:[%s1 + $0x28] sm:$0xf]
      %v217 = vld [vmem:[%s1 + $0x2c] sm:$0xf]
      %v218 = vld [vmem:[%s1 + $0x30] sm:$0xf]
      %v219 = vld [vmem:[%s1 + $0x34] sm:$0xf]
      %v220 = vld [vmem:[%s1 + $0x38] sm:$0xf]
      %v221 = vld [vmem:[%s1 + $0x3c] sm:$0xf]
      %v254 = vunpack.c.l.b16 %v174
      %v255 = vunpack.c.l.b16 %v175
      %v256 = vunpack.c.l.b16 %v176
      %v257 = vunpack.c.l.b16 %v177
      %v258 = vunpack.c.l.b16 %v178
      %v259 = vunpack.c.l.b16 %v179
      %v260 = vunpack.c.l.b16 %v180
      %v261 = vunpack.c.l.b16 %v181
      %v262 = vunpack.c.l.b16 %v182
      %v263 = vunpack.c.l.b16 %v183
      %v264 = vunpack.c.l.b16 %v184
      %v265 = vunpack.c.l.b16 %v185
      %v266 = vunpack.c.l.b16 %v186
      %v267 = vunpack.c.l.b16 %v187
      %v268 = vunpack.c.l.b16 %v188
      %v269 = vunpack.c.l.b16 %v189
      %v270 = vunpack.c.l.b16 %v190
      %v271 = vunpack.c.l.b16 %v191
      %v272 = vunpack.c.l.b16 %v192
      %v273 = vunpack.c.l.b16 %v193
      %v274 = vunpack.c.l.b16 %v194
      %v275 = vunpack.c.l.b16 %v195
      %v276 = vunpack.c.l.b16 %v196
      %v277 = vunpack.c.l.b16 %v197
      %v278 = vunpack.c.l.b16 %v198
      %v279 = vunpack.c.l.b16 %v199
      %v280 = vunpack.c.l.b16 %v200
      %v281 = vunpack.c.l.b16 %v201
      %v282 = vunpack.c.l.b16 %v202
      %v283 = vunpack.c.l.b16 %v203
      %v284 = vunpack.c.l.b16 %v204
      %v285 = vunpack.c.l.b16 %v205
      %v286 = vpack.c.b16 %v255, %v254
      %v287 = vpack.c.b16 %v257, %v256
      %v288 = vpack.c.b16 %v259, %v258
      %v289 = vpack.c.b16 %v261, %v260
      %v290 = vpack.c.b16 %v263, %v262
      %v291 = vpack.c.b16 %v265, %v264
      %v292 = vpack.c.b16 %v267, %v266
      %v293 = vpack.c.b16 %v269, %v268
      %v294 = vpack.c.b16 %v271, %v270
      %v295 = vpack.c.b16 %v273, %v272
      %v296 = vpack.c.b16 %v275, %v274
      %v297 = vpack.c.b16 %v277, %v276
      %v298 = vpack.c.b16 %v279, %v278
      %v299 = vpack.c.b16 %v281, %v280
      %v300 = vpack.c.b16 %v283, %v282
      %v301 = vpack.c.b16 %v285, %v284
      %v334 = vunpack.c.l.b16 %v206
      %v335 = vunpack.c.l.b16 %v207
      %v336 = vunpack.c.l.b16 %v208
      %v337 = vunpack.c.l.b16 %v209
      %v338 = vunpack.c.l.b16 %v210
      %v339 = vunpack.c.l.b16 %v211
      %v340 = vunpack.c.l.b16 %v212
      %v341 = vunpack.c.l.b16 %v213
      %v342 = vunpack.c.l.b16 %v214
      %v343 = vunpack.c.l.b16 %v215
      %v344 = vunpack.c.l.b16 %v216
      %v345 = vunpack.c.l.b16 %v217
      %v346 = vunpack.c.l.b16 %v218
      %v347 = vunpack.c.l.b16 %v219
      %v348 = vunpack.c.l.b16 %v220
      %v349 = vunpack.c.l.b16 %v221
      %v350 = vpack.c.b16 %v335, %v334
      %v351 = vpack.c.b16 %v337, %v336
      %v352 = vpack.c.b16 %v339, %v338
      %v353 = vpack.c.b16 %v341, %v340
      %v354 = vpack.c.b16 %v343, %v342
      %v355 = vpack.c.b16 %v345, %v344
      %v356 = vpack.c.b16 %v347, %v346
      %v357 = vpack.c.b16 %v349, %v348
      %366 = vmatpush.bf16.msra.mxu0 %v357
      %367 = vmatpush.bf16.msra.mxu0 %v356
      %368 = vmatpush.bf16.msra.mxu0 %v355
      %369 = vmatpush.bf16.msra.mxu0 %v354
      %370 = vmatpush.bf16.msra.mxu0 %v353
      %371 = vmatpush.bf16.msra.mxu0 %v352
      %372 = vmatpush.bf16.msra.mxu0 %v351
      %373 = vmatpush.bf16.msra.mxu0 %v350
      %374 = vmatmul.bf16.gmra.mxu0 %v286
      %v375 = vpop.f32.mrf.mxu0
      %v376 = vadd.f32 0.0, %v375
      %v377 = vpop.f32.mrf.mxu0
      %v378 = vadd.f32 0.0, %v377
      %379 = vmatmul.bf16.gmra.mxu0 %v287
      %v380 = vpop.f32.mrf.mxu0
      %v381 = vadd.f32 0.0, %v380
      %v382 = vpop.f32.mrf.mxu0
      %v383 = vadd.f32 0.0, %v382
      %384 = vmatmul.bf16.gmra.mxu0 %v288
      %v385 = vpop.f32.mrf.mxu0
      %v386 = vadd.f32 0.0, %v385
      %v387 = vpop.f32.mrf.mxu0
      %v388 = vadd.f32 0.0, %v387
      %389 = vmatmul.bf16.gmra.mxu0 %v289
      %v390 = vpop.f32.mrf.mxu0
      %v391 = vadd.f32 0.0, %v390
      %v392 = vpop.f32.mrf.mxu0
      %v393 = vadd.f32 0.0, %v392
      %394 = vmatmul.bf16.gmra.mxu0 %v290
      %v395 = vpop.f32.mrf.mxu0
      %v396 = vadd.f32 0.0, %v395
      %v397 = vpop.f32.mrf.mxu0
      %v398 = vadd.f32 0.0, %v397
      %399 = vmatmul.bf16.gmra.mxu0 %v291
      %v400 = vpop.f32.mrf.mxu0
      %v401 = vadd.f32 0.0, %v400
      %v402 = vpop.f32.mrf.mxu0
      %v403 = vadd.f32 0.0, %v402
      %404 = vmatmul.bf16.gmra.mxu0 %v292
      %v405 = vpop.f32.mrf.mxu0
      %v406 = vadd.f32 0.0, %v405
      %v407 = vpop.f32.mrf.mxu0
      %v408 = vadd.f32 0.0, %v407
      %409 = vmatmul.bf16.gmra.mxu0 %v293
      %v410 = vpop.f32.mrf.mxu0
      %v411 = vadd.f32 0.0, %v410
      %v412 = vpop.f32.mrf.mxu0
      %v413 = vadd.f32 0.0, %v412
      %414 = vmatmul.bf16.gmra.mxu0 %v294
      %v415 = vpop.f32.mrf.mxu0
      %v416 = vadd.f32 0.0, %v415
      %v417 = vpop.f32.mrf.mxu0
      %v418 = vadd.f32 0.0, %v417
      %419 = vmatmul.bf16.gmra.mxu0 %v295
      %v420 = vpop.f32.mrf.mxu0
      %v421 = vadd.f32 0.0, %v420
      %v422 = vpop.f32.mrf.mxu0
      %v423 = vadd.f32 0.0, %v422
      %424 = vmatmul.bf16.gmra.mxu0 %v296
      %v425 = vpop.f32.mrf.mxu0
      %v426 = vadd.f32 0.0, %v425
      %v427 = vpop.f32.mrf.mxu0
      %v428 = vadd.f32 0.0, %v427
      %429 = vmatmul.bf16.gmra.mxu0 %v297
      %v430 = vpop.f32.mrf.mxu0
      %v431 = vadd.f32 0.0, %v430
      %v432 = vpop.f32.mrf.mxu0
      %v433 = vadd.f32 0.0, %v432
      %434 = vmatmul.bf16.gmra.mxu0 %v298
      %v435 = vpop.f32.mrf.mxu0
      %v436 = vadd.f32 0.0, %v435
      %v437 = vpop.f32.mrf.mxu0
      %v438 = vadd.f32 0.0, %v437
      %439 = vmatmul.bf16.gmra.mxu0 %v299
      %v440 = vpop.f32.mrf.mxu0
      %v441 = vadd.f32 0.0, %v440
      %v442 = vpop.f32.mrf.mxu0
      %v443 = vadd.f32 0.0, %v442
      %444 = vmatmul.bf16.gmra.mxu0 %v300
      %v445 = vpop.f32.mrf.mxu0
      %v446 = vadd.f32 0.0, %v445
      %v447 = vpop.f32.mrf.mxu0
      %v448 = vadd.f32 0.0, %v447
      %449 = vmatmul.bf16.gmra.mxu0 %v301
      %v450 = vpop.f32.mrf.mxu0
      %v451 = vadd.f32 0.0, %v450
      %v452 = vpop.f32.mrf.mxu0
      %v453 = vadd.f32 0.0, %v452
      %454 = vdwg.mxu0
      %v455 = vpack.c.bf16 %v378, %v376
      %v456 = vpack.c.bf16 %v383, %v381
      %v457 = vpack.c.bf16 %v388, %v386
      %v458 = vpack.c.bf16 %v393, %v391
      %v459 = vpack.c.bf16 %v398, %v396
      %v460 = vpack.c.bf16 %v403, %v401
      %v461 = vpack.c.bf16 %v408, %v406
      %v462 = vpack.c.bf16 %v413, %v411
      %v463 = vpack.c.bf16 %v418, %v416
      %v464 = vpack.c.bf16 %v423, %v421
      %v465 = vpack.c.bf16 %v428, %v426
      %v466 = vpack.c.bf16 %v433, %v431
      %v467 = vpack.c.bf16 %v438, %v436
      %v468 = vpack.c.bf16 %v443, %v441
      %v469 = vpack.c.bf16 %v448, %v446
      %v470 = vpack.c.bf16 %v453, %v451
      %v471 = vld [vmem:[%s2] sm:$0xf]
      %v472 = vld [vmem:[%s2 + $0x4] sm:$0xf]
      %v473 = vld [vmem:[%s2 + $0x8] sm:$0xf]
      %v474 = vld [vmem:[%s2 + $0xc] sm:$0xf]
      %v475 = vld [vmem:[%s2 + $0x10] sm:$0xf]
      %v476 = vld [vmem:[%s2 + $0x14] sm:$0xf]
      %v477 = vld [vmem:[%s2 + $0x18] sm:$0xf]
      %v478 = vld [vmem:[%s2 + $0x1c] sm:$0xf]
      %v479 = vld [vmem:[%s2 + $0x20] sm:$0xf]
      %v480 = vld [vmem:[%s2 + $0x24] sm:$0xf]
      %v481 = vld [vmem:[%s2 + $0x28] sm:$0xf]
      %v482 = vld [vmem:[%s2 + $0x2c] sm:$0xf]
      %v483 = vld [vmem:[%s2 + $0x30] sm:$0xf]
      %v484 = vld [vmem:[%s2 + $0x34] sm:$0xf]
      %v485 = vld [vmem:[%s2 + $0x38] sm:$0xf]
      %v486 = vld [vmem:[%s2 + $0x3c] sm:$0xf]
      %v503 = vunpack.c.l.b16 %v471
      %v504 = vunpack.c.l.b16 %v472
      %v505 = vunpack.c.l.b16 %v473
      %v506 = vunpack.c.l.b16 %v474
      %v507 = vunpack.c.l.b16 %v475
      %v508 = vunpack.c.l.b16 %v476
      %v509 = vunpack.c.l.b16 %v477
      %v510 = vunpack.c.l.b16 %v478
      %v511 = vunpack.c.l.b16 %v479
      %v512 = vunpack.c.l.b16 %v480
      %v513 = vunpack.c.l.b16 %v481
      %v514 = vunpack.c.l.b16 %v482
      %v515 = vunpack.c.l.b16 %v483
      %v516 = vunpack.c.l.b16 %v484
      %v517 = vunpack.c.l.b16 %v485
      %v518 = vunpack.c.l.b16 %v486
      %v519 = vpack.c.b16 %v504, %v503
      %v520 = vpack.c.b16 %v506, %v505
      %v521 = vpack.c.b16 %v508, %v507
      %v522 = vpack.c.b16 %v510, %v509
      %v523 = vpack.c.b16 %v512, %v511
      %v524 = vpack.c.b16 %v514, %v513
      %v525 = vpack.c.b16 %v516, %v515
      %v526 = vpack.c.b16 %v518, %v517
      %535 = vmatpush.bf16.msra.mxu0 %v526
      %536 = vmatpush.bf16.msra.mxu0 %v525
      %537 = vmatpush.bf16.msra.mxu0 %v524
      %538 = vmatpush.bf16.msra.mxu0 %v523
      %539 = vmatpush.bf16.msra.mxu0 %v522
      %540 = vmatpush.bf16.msra.mxu0 %v521
      %541 = vmatpush.bf16.msra.mxu0 %v520
      %542 = vmatpush.bf16.msra.mxu0 %v519
      %543 = vmatmul.bf16.gmra.mxu0 %v455
      %v544 = vpop.f32.mrf.mxu0
      %v545 = vadd.f32 0.0, %v544
      %v546 = vpop.f32.mrf.mxu0
      %v547 = vadd.f32 0.0, %v546
      %548 = vmatmul.bf16.gmra.mxu0 %v456
      %v549 = vpop.f32.mrf.mxu0
      %v550 = vadd.f32 0.0, %v549
      %v551 = vpop.f32.mrf.mxu0
      %v552 = vadd.f32 0.0, %v551
      %553 = vmatmul.bf16.gmra.mxu0 %v457
      %v554 = vpop.f32.mrf.mxu0
      %v555 = vadd.f32 0.0, %v554
      %v556 = vpop.f32.mrf.mxu0
      %v557 = vadd.f32 0.0, %v556
      %558 = vmatmul.bf16.gmra.mxu0 %v458
      %v559 = vpop.f32.mrf.mxu0
      %v560 = vadd.f32 0.0, %v559
      %v561 = vpop.f32.mrf.mxu0
      %v562 = vadd.f32 0.0, %v561
      %563 = vmatmul.bf16.gmra.mxu0 %v459
      %v564 = vpop.f32.mrf.mxu0
      %v565 = vadd.f32 0.0, %v564
      %v566 = vpop.f32.mrf.mxu0
      %v567 = vadd.f32 0.0, %v566
      %568 = vmatmul.bf16.gmra.mxu0 %v460
      %v569 = vpop.f32.mrf.mxu0
      %v570 = vadd.f32 0.0, %v569
      %v571 = vpop.f32.mrf.mxu0
      %v572 = vadd.f32 0.0, %v571
      %573 = vmatmul.bf16.gmra.mxu0 %v461
      %v574 = vpop.f32.mrf.mxu0
      %v575 = vadd.f32 0.0, %v574
      %v576 = vpop.f32.mrf.mxu0
      %v577 = vadd.f32 0.0, %v576
      %578 = vmatmul.bf16.gmra.mxu0 %v462
      %v579 = vpop.f32.mrf.mxu0
      %v580 = vadd.f32 0.0, %v579
      %v581 = vpop.f32.mrf.mxu0
      %v582 = vadd.f32 0.0, %v581
      %583 = vmatmul.bf16.gmra.mxu0 %v463
      %v584 = vpop.f32.mrf.mxu0
      %v585 = vadd.f32 0.0, %v584
      %v586 = vpop.f32.mrf.mxu0
      %v587 = vadd.f32 0.0, %v586
      %588 = vmatmul.bf16.gmra.mxu0 %v464
      %v589 = vpop.f32.mrf.mxu0
      %v590 = vadd.f32 0.0, %v589
      %v591 = vpop.f32.mrf.mxu0
      %v592 = vadd.f32 0.0, %v591
      %593 = vmatmul.bf16.gmra.mxu0 %v465
      %v594 = vpop.f32.mrf.mxu0
      %v595 = vadd.f32 0.0, %v594
      %v596 = vpop.f32.mrf.mxu0
      %v597 = vadd.f32 0.0, %v596
      %598 = vmatmul.bf16.gmra.mxu0 %v466
      %v599 = vpop.f32.mrf.mxu0
      %v600 = vadd.f32 0.0, %v599
      %v601 = vpop.f32.mrf.mxu0
      %v602 = vadd.f32 0.0, %v601
      %603 = vmatmul.bf16.gmra.mxu0 %v467
      %v604 = vpop.f32.mrf.mxu0
      %v605 = vadd.f32 0.0, %v604
      %v606 = vpop.f32.mrf.mxu0
      %v607 = vadd.f32 0.0, %v606
      %608 = vmatmul.bf16.gmra.mxu0 %v468
      %v609 = vpop.f32.mrf.mxu0
      %v610 = vadd.f32 0.0, %v609
      %v611 = vpop.f32.mrf.mxu0
      %v612 = vadd.f32 0.0, %v611
      %613 = vmatmul.bf16.gmra.mxu0 %v469
      %v614 = vpop.f32.mrf.mxu0
      %v615 = vadd.f32 0.0, %v614
      %v616 = vpop.f32.mrf.mxu0
      %v617 = vadd.f32 0.0, %v616
      %618 = vmatmul.bf16.gmra.mxu0 %v470
      %v619 = vpop.f32.mrf.mxu0
      %v620 = vadd.f32 0.0, %v619
      %v621 = vpop.f32.mrf.mxu0
      %v622 = vadd.f32 0.0, %v621
      %623 = vdwg.mxu0
      %624 = vst [vmem:[%s172] sm:$0xff] %v545
      %625 = vst [vmem:[%s172 + $0x8] sm:$0xff] %v547
      %626 = vst [vmem:[%s172 + $0x10] sm:$0xff] %v550
      %627 = vst [vmem:[%s172 + $0x18] sm:$0xff] %v552
      %628 = vst [vmem:[%s172 + $0x20] sm:$0xff] %v555
      %629 = vst [vmem:[%s172 + $0x28] sm:$0xff] %v557
      %630 = vst [vmem:[%s172 + $0x30] sm:$0xff] %v560
      %631 = vst [vmem:[%s172 + $0x38] sm:$0xff] %v562
      %632 = vst [vmem:[%s172 + $0x40] sm:$0xff] %v565
      %633 = vst [vmem:[%s172 + $0x48] sm:$0xff] %v567
      %634 = vst [vmem:[%s172 + $0x50] sm:$0xff] %v570
      %635 = vst [vmem:[%s172 + $0x58] sm:$0xff] %v572
      %636 = vst [vmem:[%s172 + $0x60] sm:$0xff] %v575
      %637 = vst [vmem:[%s172 + $0x68] sm:$0xff] %v577
      %638 = vst [vmem:[%s172 + $0x70] sm:$0xff] %v580
      %639 = vst [vmem:[%s172 + $0x78] sm:$0xff] %v582
      %640 = vst [vmem:[%s172 + $0x80] sm:$0xff] %v585
      %641 = vst [vmem:[%s172 + $0x88] sm:$0xff] %v587
      %642 = vst [vmem:[%s172 + $0x90] sm:$0xff] %v590
      %643 = vst [vmem:[%s172 + $0x98] sm:$0xff] %v592
      %644 = vst [vmem:[%s172 + $0xa0] sm:$0xff] %v595
      %645 = vst [vmem:[%s172 + $0xa8] sm:$0xff] %v597
      %646 = vst [vmem:[%s172 + $0xb0] sm:$0xff] %v600
      %647 = vst [vmem:[%s172 + $0xb8] sm:$0xff] %v602
      %648 = vst [vmem:[%s172 + $0xc0] sm:$0xff] %v605
      %649 = vst [vmem:[%s172 + $0xc8] sm:$0xff] %v607
      %650 = vst [vmem:[%s172 + $0xd0] sm:$0xff] %v610
      %651 = vst [vmem:[%s172 + $0xd8] sm:$0xff] %v612
      %652 = vst [vmem:[%s172 + $0xe0] sm:$0xff] %v615
      %653 = vst [vmem:[%s172 + $0xe8] sm:$0xff] %v617
      %654 = vst [vmem:[%s172 + $0xf0] sm:$0xff] %v620
      %655 = vst [vmem:[%s172 + $0xf8] sm:$0xff] %v622
      %s656 = smul.u32 32, %s14
      %p657 = scmp.lt.s32.totalorder %s656, 127
      %s658 = scalar_select %p657, %s656, 127
      %s659 = smul.addr %s658, 8
      %s660 = scalar_lea.vmem %s3, %s659
      // Predicated region
      $region33: #{two_linear.1} parent=31 // pred_check
        %p661 = pneg %p100
      $region34: #{two_linear.1} parent=31 // pred_check_branch
        %663 = sbr.rel (%p661) target = $region36
      $region35: #{two_linear.1} parent=31 // pred_region
        %s664 = smul.u32 32, %s14
      $region36: #{two_linear.1} parent=31 // pred_fallthru
        _
    $region32: #{two_linear.1} parent=5 // pred_fallthru
      _
    %p665 = scmp.le.s32.totalorder 2, %s9
    // Predicated region
    $region37: #{two_linear.1} parent=5 // pred_check
      %p666 = pneg %p665
    $region38: #{two_linear.1} parent=5 // pred_check_branch
      %668 = sbr.rel (%p666) target = $region40
    $region39: #{two_linear.1} parent=5 // pred_region
      %s669 = ssub.s32 %s9, 2
      // Predicated region
      $region41: #{two_linear.1} parent=39 // pred_check
        %p670 = pneg %p106
      $region42: #{two_linear.1} parent=39 // pred_check_branch
        %672 = sbr.rel (%p670) target = $region44
      $region43: #{two_linear.1} parent=39 // pred_region
        %s673 = smul.u32 32, %s15
        %p674 = scmp.lt.s32.totalorder %s673, 127
        %s675 = scalar_select %p674, %s673, 127
        %s676 = smul.addr %s675, 8
        %s677 = scalar_lea.vmem %s3, %s676
      $region44: #{two_linear.1} parent=39 // pred_fallthru
        _
    $region40: #{two_linear.1} parent=5 // pred_fallthru
      _
  $region6: #{two_linear.1} parent=0 // loop_footer
    %s13 = sadd.s32 1, %s9
  $region7: #{two_linear.1} parent=0 // loop_footer_branch
    %8 = sbr.rel target = $region3
  $region8: #{two_linear.1} parent=0 // loop_exit
    _

</llo_original>
